<compile_context>
chip_gen: v5e
topology: v5e:2x2
jax: 0.10.0
libtpu: 0.0.40
codegen_flags: <defaults>
</compile_context>

<pallas_src>
import jax
import jax.numpy as jnp
from jax import lax
from jax.experimental import pallas as pl
from jax.experimental.pallas import tpu as pltpu


# ---------------- fused GCN + ReLU + residual kernel ----------------

def gcn_fused_kernel(a_ref, x_ref, w_ref, b_ref, o_ref, acc_ref):
    # grid = (M_tiles, N_tiles, K_tiles), K innermost ("arbitrary").
    # a_ref  : (bpm, Cp, Cp) f32  per-batch normalized adjacency for this M tile
    # x_ref  : (tm, HWp)          X rows, resident across j/k (original dtype)
    # w_ref  : (tk, tn)           GCN weight tile (mm_dtype)
    # b_ref  : (1, tn)  f32       bias tile
    # o_ref  : (tm, tn)           output tile
    # acc_ref: (tm, tn) f32       X @ W accumulator (VMEM scratch)
    j = pl.program_id(1)
    k = pl.program_id(2)
    tk, tn = w_ref.shape
    bpm, cp, _ = a_ref.shape
    tm = o_ref.shape[0]

    # X @ W partial product for this K tile: K-slice the resident X block
    # (no per-(j,k) re-DMA of X from HBM), cast to the MXU operand dtype,
    # accumulate in f32.
    k_start = pl.multiple_of(k * tk, 128)
    x_k = x_ref[:, pl.ds(k_start, tk)].astype(w_ref.dtype)
    part = jnp.dot(x_k, w_ref[...], preferred_element_type=jnp.float32)

    @pl.when(k == 0)
    def _first():
        acc_ref[...] = part              # write-through; no zero-fill pass

    @pl.when(k > 0)
    def _accumulate():
        acc_ref[...] += part

    @pl.when(k == pl.num_programs(2) - 1)
    def _epilogue():
        # Per-batch neighborhood aggregation A_norm @ (X W) as a batched dot
        # over the bpm batches in this tile (only tm*Cp*tn useful flops, no
        # block-diagonal waste).  The reshapes are layout-free because
        # Cp % 8 == 0 and tn % 128 == 0.
        acc3 = acc_ref[...].reshape(bpm, cp, tn)
        agg = jnp.einsum('bij,bjd->bid', a_ref[...], acc3,
                         preferred_element_type=jnp.float32)
        # Residual comes from the same resident X block (no extra input DMA).
        n_start = pl.multiple_of(j * tn, 128)
        xres = x_ref[:, pl.ds(n_start, tn)].astype(jnp.float32)
        out = jnp.maximum(agg.reshape(tm, tn) + b_ref[...], 0.0) + xres
        o_ref[...] = out.astype(o_ref.dtype)


# ---------------- tiling helpers ----------------

def _round_up(x, m):
    return ((x + m - 1) // m) * m


def _choose_lane_tile_and_pad(dim, cap=512, max_pad_ratio=1.25):
    """Pick a lane tile (multiple of 128, <= cap) and the padded dim (multiple
    of the tile).  Prefers big tiles (amortize ~0.35us/step grid overhead)
    while bounding zero-padding relative to the minimal 128-padded size."""
    base = _round_up(dim, 128)
    t = (min(cap, base) // 128) * 128
    while t >= 128:
        p = _round_up(dim, t)
        if p <= base * max_pad_ratio:
            return t, p
        t -= 128
    return 128, base


def _choose_bpm(B, c_p, hw_p, x_bytes, tm_cap=512, x_budget=12 << 20):
    """Batches folded into one M tile.  tm = bpm*c_p is capped both by tm_cap
    and by a VMEM budget for the (double-buffered) resident (tm, HWp) X block
    so tile choices stay legal on v7x's 64 MiB VMEM."""
    rows_budget = x_budget // max(1, 2 * hw_p * x_bytes)
    cap_rows = max(c_p, min(tm_cap, rows_budget))
    bpm = 1
    for d in range(1, B + 1):
        if B % d == 0 and d * c_p <= cap_rows:
            bpm = d
    return bpm


def _largest_proper_divisor(n):
    for d in range(n // 2, 0, -1):
        if n % d == 0:
            return d
    return 1


# ---------------- wrappers ----------------

def gcn_relu_residual(a_norm, x_flat, w, bias, *, mm_dtype=None):
    """relu(A_norm[b] @ (X[b] @ W) + bias) + X[b] for all batches, one pallas_call."""
    B, C, HW = x_flat.shape
    if mm_dtype is None:
        mm_dtype = x_flat.dtype          # exact module semantics by default
    x_bytes = jnp.dtype(x_flat.dtype).itemsize
    mm_bytes = jnp.dtype(mm_dtype).itemsize

    # Lane tile + HW padding (multiple of the tile -> lane-dense, unmasked
    # stores, no full-HW fallback); C padded to a multiple of 8 for sublane
    # alignment.  Zero padding is exact: padded W rows/cols, X cols and A
    # rows/cols contribute 0, and padded outputs are sliced off below.
    lane_t, HWp = _choose_lane_tile_and_pad(HW, cap=512)
    Cp = _round_up(C, 8)
    tk = tn = lane_t

    x_p = x_flat
    if Cp != C or HWp != HW:
        x_p = jnp.pad(x_flat, ((0, 0), (0, Cp - C), (0, HWp - HW)))
    # TODO(synk): for production, store W persistently in bf16 (fp8 on v7x)
    # instead of this per-call astype, which re-reads/writes all of W in HBM.
    w_p = w.astype(mm_dtype)
    if HWp != HW:
        w_p = jnp.pad(w_p, ((0, HWp - HW), (0, HWp - HW)))
    b_p = jnp.asarray(bias, jnp.float32).reshape(1, -1)
    if HWp != HW:
        b_p = jnp.pad(b_p, ((0, 0), (0, HWp - HW)))
    a_p = a_norm.astype(jnp.float32)
    if Cp != C:
        a_p = jnp.pad(a_p, ((0, 0), (0, Cp - C), (0, Cp - C)))

    # M-tile selection (batches per tile) under a VMEM budget for resident X.
    bpm = _choose_bpm(B, Cp, HWp, x_bytes, tm_cap=512)
    tm = bpm * Cp
    m_tiles = B // bpm
    n_tiles = HWp // tn

    # v7x has 2 TensorCores: guarantee >= 2 "parallel" grid tiles.
    if m_tiles * n_tiles == 1:
        if B > 1:
            bpm = _largest_proper_divisor(B)
            tm = bpm * Cp
            m_tiles = B // bpm
        elif HWp >= 256:
            t = (HWp // 2) // 128 * 128
            while t > 128 and HWp % t != 0:
                t -= 128
            tn = max(t, 128)
            n_tiles = HWp // tn

    k_tiles = HWp // tk
    grid = (m_tiles, n_tiles, k_tiles)

    # Fold batch into the matmul M dimension (batch-major row groups).
    x2 = x_p.reshape(B * Cp, HWp)

    # VMEM budget (double-buffered streams + scratch) -> vmem_limit_bytes
    # (v5e scoped default is 16 MiB; stay well under v7x's 64 MiB physical).
    est = (2 * bpm * Cp * Cp * 4          # A
           + 2 * tm * HWp * x_bytes       # resident X block
           + 2 * tk * tn * mm_bytes       # W stream
           + 2 * 8 * tn * 4               # bias (sublane-padded)
           + 2 * tm * tn * x_bytes        # output
           + tm * tn * 4)                 # f32 accumulator scratch
    vmem_limit = int(min(100 << 20, max(32 << 20, est * 3 // 2 + (1 << 20))))

    out2 = pl.pallas_call(
        gcn_fused_kernel,
        out_shape=jax.ShapeDtypeStruct((B * Cp, HWp), x_flat.dtype),
        grid_spec=pltpu.PrefetchScalarGridSpec(
            num_scalar_prefetch=0,
            grid=grid,
            in_specs=[
                pl.BlockSpec((bpm, Cp, Cp), lambda i, j, k: (i, 0, 0)),  # A per batch
                pl.BlockSpec((tm, HWp), lambda i, j, k: (i, 0)),         # X resident
                pl.BlockSpec((tk, tn), lambda i, j, k: (k, j)),          # W tile
                pl.BlockSpec((1, tn), lambda i, j, k: (0, j)),           # bias
            ],
            out_specs=pl.BlockSpec((tm, tn), lambda i, j, k: (i, j)),
            scratch_shapes=[pltpu.VMEM((tm, tn), jnp.float32)],
        ),
        compiler_params=pltpu.CompilerParams(
            dimension_semantics=("parallel", "parallel", "arbitrary"),
            vmem_limit_bytes=vmem_limit),
    )(a_p, x2, w_p, b_p)

    # Slice off C/HW padding.
    return out2.reshape(B, Cp, HWp)[:, :C, :HW]


def build_normalized_adjacency(gap, k):
    # gap: (B, C) channel-wise global averages (f32).
    # get_euclidean: S[b,i,j] = -(gap_i - gap_j)^2, diag = -inf
    # reconstruct_graph: top-k neighbors per node; to_undirected; GCNConv adds
    # self loops and applies symmetric normalization D^-1/2 (A+I) D^-1/2.
    B, C = gap.shape
    diff = gap[:, :, None] - gap[:, None, :]
    sim = -(diff * diff)
    sim = jnp.where(jnp.eye(C, dtype=bool)[None], -jnp.inf, sim)   # fill_diagonal_(-inf)
    _, idx = lax.top_k(sim, k)                                     # (B, C, k)
    cols = jnp.arange(C)
    a = (idx[..., None] == cols).any(axis=2).astype(jnp.float32)   # (B, C, C) 0/1
    a = jnp.maximum(a, jnp.swapaxes(a, 1, 2))                      # to_undirected
    a_hat = a + jnp.eye(C, dtype=jnp.float32)[None]                # add self loops
    deg = a_hat.sum(axis=-1)
    dinv = lax.rsqrt(deg)
    return a_hat * dinv[:, :, None] * dinv[:, None, :]


def re_graph_forward(feature_map, w, bias, k=5, mm_dtype=None):
    B, C, H, W = feature_map.shape
    HW = H * W
    x_flat = feature_map.reshape(B, C, HW)                         # graph_feature
    # GAP == adaptive_avg_pool2d(.,(1,1)): plain-JAX mean accumulated in f32
    # (HBM-BW bound; a dedicated pallas_call with a lane-1 output only adds
    #  launch overhead and masked stores).
    gap = jnp.mean(x_flat.astype(jnp.float32), axis=2)             # (B, C)
    # TODO(synk): torch.topk / sparse edge_index construction has no clean
    # Pallas form; tiny CxC graph glue stays in plain JAX.
    a_norm = build_normalized_adjacency(gap, k)
    out = gcn_relu_residual(a_norm, x_flat, w, bias, mm_dtype=mm_dtype)
    return out.reshape(B, C, H, W)


if __name__ == "__main__":
    B, C, H, W = 2, 8, 8, 8            # small shapes consistent with the module
    HW = H * W
    key = jax.random.PRNGKey(0)
    k_fm, k_w = jax.random.split(key)
    feature_map = jax.random.normal(k_fm, (B, C, H, W), dtype=jnp.float32)

    # GCNConv(HW, HW) parameters: glorot-uniform weight, zero bias (deterministic).
    limit = (6.0 / (HW + HW)) ** 0.5
    w = jax.random.uniform(k_w, (HW, HW), minval=-limit, maxval=limit,
                           dtype=jnp.float32)
    bias = jnp.zeros((1, HW), dtype=jnp.float32)

    out = re_graph_forward(feature_map, w, bias, k=5)
    jax.block_until_ready(out)
    assert out.shape == feature_map.shape and out.dtype == feature_map.dtype

    # Pure-JAX reference check (same graph construction, f32 matmuls).
    x_flat = feature_map.reshape(B, C, HW)
    gap = jnp.mean(x_flat.astype(jnp.float32), axis=2)
    a_norm = build_normalized_adjacency(gap, 5)
    xw = jnp.einsum('bcd,de->bce', x_flat, w, precision='highest')
    ref = jnp.maximum(jnp.einsum('bij,bjd->bid', a_norm, xw, precision='highest')
                      + bias, 0.0) + x_flat
    ref = ref.reshape(B, C, H, W)
    assert jnp.allclose(out, ref, atol=1e-3, rtol=1e-3)

    print("KERNEL_OK")
</pallas_src>

<mosaic_0001>
module attributes {stable_mosaic.version = 11 : i64} {
  func.func @gcn_fused_kernel(%arg0: i32, %arg1: i32, %arg2: i32, %arg3: memref<1x8x8xf32, #tpu.memory_space<vmem>>, %arg4: memref<8x128xf32, #tpu.memory_space<vmem>>, %arg5: memref<128x128xf32, #tpu.memory_space<vmem>>, %arg6: memref<1x128xf32, #tpu.memory_space<vmem>>, %arg7: memref<8x128xf32, #tpu.memory_space<vmem>>, %arg8: memref<8x128xf32, #tpu.memory_space<vmem>>) attributes {dimension_semantics = [#tpu.dimension_semantics<parallel>, #tpu.dimension_semantics<parallel>, #tpu.dimension_semantics<arbitrary>], iteration_bounds = array<i64: 2, 1, 1>, scalar_prefetch = 0 : i64, scratch_operands = 1 : i64, tpu.core_type = #tpu.core_type<tc>, window_params = [{transform_indices = @transform_0, window_bounds = array<i64: 1, 8, 8>}, {transform_indices = @transform_1, window_bounds = array<i64: 8, 128>}, {transform_indices = @transform_2, window_bounds = array<i64: 128, 128>}, {transform_indices = @transform_3, window_bounds = array<i64: 1, 128>}, {transform_indices = @transform_4, window_bounds = array<i64: 8, 128>}]} {
    %c128_i32 = arith.constant 128 : i32
    %0 = arith.muli %arg2, %c128_i32 : i32
    %1 = tpu.assume_multiple %0, 128 : i32
    %c0 = arith.constant 0 : index
    %2 = arith.index_cast %1 : i32 to index
    %3 = vector.load %arg4[%c0, %2] : memref<8x128xf32, #tpu.memory_space<vmem>>, vector<8x128xf32>
    %c0_0 = arith.constant 0 : index
    %c0_1 = arith.constant 0 : index
    %4 = vector.load %arg5[%c0_0, %c0_1] : memref<128x128xf32, #tpu.memory_space<vmem>>, vector<128x128xf32>
    %cst = arith.constant dense<0.000000e+00> : vector<8x128xf32>
    %5 = tpu.matmul %3, %4, %cst {dimension_numbers = #tpu.dot_dimension_numbers<[1], [0], [0], [1], [0, 0, 1, 1], [], []>} : vector<8x128xf32>, vector<128x128xf32>, vector<8x128xf32> -> vector<8x128xf32>
    %c0_i32 = arith.constant 0 : i32
    %6 = arith.cmpi eq, %arg2, %c0_i32 : i32
    %7 = arith.extui %6 : i1 to i32
    %c0_i32_2 = arith.constant 0 : i32
    %8 = arith.cmpi ne, %7, %c0_i32_2 : i32
    scf.if %8 {
      %c0_7 = arith.constant 0 : index
      %c0_8 = arith.constant 0 : index
      %15 = vector.load %arg8[%c0_7, %c0_8] : memref<8x128xf32, #tpu.memory_space<vmem>>, vector<8x128xf32>
      tpu.vector_store %arg8[%c0_7, %c0_8], %5 {strides = array<i32>} : memref<8x128xf32, #tpu.memory_space<vmem>>, vector<8x128xf32>,
    } else {
    }
    %c0_i32_3 = arith.constant 0 : i32
    %9 = arith.cmpi sgt, %arg2, %c0_i32_3 : i32
    %10 = arith.extui %9 : i1 to i32
    %c0_i32_4 = arith.constant 0 : i32
    %11 = arith.cmpi ne, %10, %c0_i32_4 : i32
    scf.if %11 {
      %c0_7 = arith.constant 0 : index
      %c0_8 = arith.constant 0 : index
      %15 = vector.load %arg8[%c0_7, %c0_8] : memref<8x128xf32, #tpu.memory_space<vmem>>, vector<8x128xf32>
      %16 = arith.addf %15, %5 : vector<8x128xf32>
      %c0_9 = arith.constant 0 : index
      %c0_10 = arith.constant 0 : index
      %17 = vector.load %arg8[%c0_9, %c0_10] : memref<8x128xf32, #tpu.memory_space<vmem>>, vector<8x128xf32>
      tpu.vector_store %arg8[%c0_9, %c0_10], %16 {strides = array<i32>} : memref<8x128xf32, #tpu.memory_space<vmem>>, vector<8x128xf32>,
    } else {
    }
    %c0_i32_5 = arith.constant 0 : i32
    %12 = arith.cmpi eq, %arg2, %c0_i32_5 : i32
    %13 = arith.extui %12 : i1 to i32
    %c0_i32_6 = arith.constant 0 : i32
    %14 = arith.cmpi ne, %13, %c0_i32_6 : i32
    scf.if %14 {
      %c0_7 = arith.constant 0 : index
      %c0_8 = arith.constant 0 : index
      %15 = vector.load %arg8[%c0_7, %c0_8] : memref<8x128xf32, #tpu.memory_space<vmem>>, vector<8x128xf32>
      %16 = vector.shape_cast %15 : vector<8x128xf32> to vector<1x8x128xf32>
      %c0_9 = arith.constant 0 : index
      %c0_10 = arith.constant 0 : index
      %c0_11 = arith.constant 0 : index
      %17 = vector.load %arg3[%c0_9, %c0_10, %c0_11] : memref<1x8x8xf32, #tpu.memory_space<vmem>>, vector<1x8x8xf32>
      "tpu.trace_start"() <{level = 10 : i32, message = "bij,bjd->bid"}> : () -> ()
      %cst_12 = arith.constant dense<0.000000e+00> : vector<1x8x128xf32>
      %18 = tpu.matmul %17, %16, %cst_12 {dimension_numbers = #tpu.dot_dimension_numbers<[2], [1], [1], [2], [0, 0, 0, 1, 1, 2], [0], [0]>} : vector<1x8x8xf32>, vector<1x8x128xf32>, vector<1x8x128xf32> -> vector<1x8x128xf32>
      "tpu.trace_stop"() : () -> ()
      %c128_i32_13 = arith.constant 128 : i32
      %19 = arith.muli %arg1, %c128_i32_13 : i32
      %20 = tpu.assume_multiple %19, 128 : i32
      %c0_14 = arith.constant 0 : index
      %21 = arith.index_cast %20 : i32 to index
      %22 = vector.load %arg4[%c0_14, %21] : memref<8x128xf32, #tpu.memory_space<vmem>>, vector<8x128xf32>
      %23 = vector.shape_cast %18 : vector<1x8x128xf32> to vector<8x128xf32>
      %c0_15 = arith.constant 0 : index
      %c0_16 = arith.constant 0 : index
      %24 = vector.load %arg6[%c0_15, %c0_16] : memref<1x128xf32, #tpu.memory_space<vmem>>, vector<1x128xf32>
      %25 = vector.broadcast %24 : vector<1x128xf32> to vector<8x128xf32>
      %26 = arith.addf %23, %25 : vector<8x128xf32>
      %cst_17 = arith.constant 0.000000e+00 : f32
      %27 = vector.broadcast %cst_17 : f32 to vector<8x128xf32>
      %28 = arith.maximumf %26, %27 : vector<8x128xf32>
      %29 = arith.addf %28, %22 : vector<8x128xf32>
      %c0_18 = arith.constant 0 : index
      %c0_19 = arith.constant 0 : index
      %30 = vector.load %arg7[%c0_18, %c0_19] : memref<8x128xf32, #tpu.memory_space<vmem>>, vector<8x128xf32>
      tpu.vector_store %arg7[%c0_18, %c0_19], %29 {strides = array<i32>} : memref<8x128xf32, #tpu.memory_space<vmem>>, vector<8x128xf32>,
    } else {
    }
    return
  }
  func.func @transform_0(%arg0: i32, %arg1: i32, %arg2: i32) -> (i32, i32, i32) {
    %c0_i32 = arith.constant 0 : i32
    %c0_i32_0 = arith.constant 0 : i32
    %c0_i32_1 = arith.constant 0 : i32
    return %arg0, %c0_i32, %c0_i32_0 : i32, i32, i32
  }
  func.func @transform_1(%arg0: i32, %arg1: i32, %arg2: i32) -> (i32, i32) {
    %c0_i32 = arith.constant 0 : i32
    %c0_i32_0 = arith.constant 0 : i32
    return %arg0, %c0_i32 : i32, i32
  }
  func.func @transform_2(%arg0: i32, %arg1: i32, %arg2: i32) -> (i32, i32) {
    %c0_i32 = arith.constant 0 : i32
    return %arg2, %arg1 : i32, i32
  }
  func.func @transform_3(%arg0: i32, %arg1: i32, %arg2: i32) -> (i32, i32) {
    %c0_i32 = arith.constant 0 : i32
    %c0_i32_0 = arith.constant 0 : i32
    return %c0_i32, %arg1 : i32, i32
  }
  func.func @transform_4(%arg0: i32, %arg1: i32, %arg2: i32) -> (i32, i32) {
    %c0_i32 = arith.constant 0 : i32
    return %arg0, %arg1 : i32, i32
  }
}

</mosaic_0001>

<llo_original>
// kernel: tpu_custom_call.1
$region0: #{tpu_custom_call.1}
  #allocation0 [shape = 'u32[]', space=smem, size = 0x4, offset = 0x4, fixed_abs, tag = 'smem constant byte address 0x4 - core index']
  #allocation1 [shape = 'u32[72,128]{1,0:T(1,128)}', space=vmem, size = 0x9000, scoped, tag = 'internal scratch']
  #allocation2 [shape = 'f32[8,128]{1,0:T(8,128)}', space=vmem, size = 0x1000, scoped, tag = 'scratch operand']
  %s0 = inlined_call_operand.hbm [shape: f32[2,8,8], index: 0, kind: input, shape index: {}]
  %s1 = inlined_call_operand.hbm [shape: f32[16,128], index: 1, kind: input, shape index: {}]
  %s2 = inlined_call_operand.hbm [shape: f32[128,128], index: 2, kind: input, shape index: {}]
  %s3 = inlined_call_operand.vmem [shape: f32[1,128], index: 3, kind: input, shape index: {}]
  %s4 = inlined_call_operand.hbm [shape: f32[16,128], index: 4, kind: output, shape index: {}]
  %s5 = sld [smem:[#allocation0]]
  $region73: #{tpu_custom_call.1} parent=0
    _
  %s7 = ssub.s32 1, %s5
  %s8 = scalar_select 0, %s7, %s5
  $region1: #{tpu_custom_call.1} parent=0
    #allocation3 [shape = 'u8[8192]{0}', space=vmem, size = 0x2000, scoped, tag = 'input window, operand 0']
    #allocation4 [shape = 's32[2]{0}', space=sflag, size = 0x8, scoped, tag = 'scoped memory for tpu_custom_call.1']
    #allocation5 [shape = 's32[2]{0}', space=sflag, size = 0x8, scoped, tag = 'scoped memory for tpu_custom_call.1']
    #allocation6 [shape = 'u8[8192]{0}', space=vmem, size = 0x2000, scoped, tag = 'input window, operand 1']
    #allocation7 [shape = 's32[2]{0}', space=sflag, size = 0x8, scoped, tag = 'scoped memory for tpu_custom_call.1']
    #allocation8 [shape = 'u8[65536]{0}', space=vmem, size = 0x10000, scoped, tag = 'input window, operand 2, single buffered']
    #allocation9 [shape = 'u8[8192]{0}', space=vmem, size = 0x2000, scoped, tag = 'output window, operand 0']
    %9 = vsyncpa [#allocation4], 0
    %s10 = scalar_lea.sflag [#allocation4], 1
    %11 = vsyncpa %s10, 0
    %12 = vsyncpa [#allocation7], 0
    %s13 = scalar_lea.sflag [#allocation7], 1
    %14 = vsyncpa %s13, 0
    %15 = vsyncpa [#allocation5], 0
    %s16 = scalar_lea.sflag [#allocation5], 1
    %17 = vsyncpa %s16, 0
    loop: start=0, step=1, limit=4
    $region2: #{tpu_custom_call.1} parent=1 // loop_pre_header
      _
    $region3: #{tpu_custom_call.1} parent=1 // loop_header
      %s19 = sphi 0, %s23
      %p20 = scmp.ge.s32.totalorder %s19, 4
      %s26 = sphi 0, %s45
      %s27 = sphi 0, %s41
      %s28 = sphi 0, %s37
      %s29 = sphi 0, %s26
      %s30 = sphi 0, %s27
      %s31 = sphi 0, %s28
      %s32 = sphi 0, %s29
      %s33 = sphi 0, %s30
      %s34 = sphi 0, %s31
      %s48 = sphi 0, %s50
      %s51 = sphi 0, %s48
      %s52 = sphi 0, %s51
      %s68 = sphi 0, %s52
      %s74 = sphi 0, %s76
      %s77 = sphi 0, %s74
      %s78 = sphi 0, %s77
      %s94 = sphi 0, %s78
      %s102 = sphi 0, %s104
      %s105 = sphi 0, %s102
      %s106 = sphi 0, %s105
      %s122 = sphi 0, %s106
      %s128 = sphi 0, %s130
      %s131 = sphi 0, %s128
      %s132 = sphi 0, %s131
      %s148 = sphi 0, %s132
      %s156 = sphi 0, %s158
      %s159 = sphi 0, %s156
      %s160 = sphi 0, %s159
      %s176 = sphi 0, %s160
    $region4: #{tpu_custom_call.1} parent=1 // loop_header_branch
      %22 = sbr.rel (%p20) target = $region8
    $region5: #{tpu_custom_call.1} parent=1 // loop_body
      %s24 = ssub.s32 %s19, 1
      %s25 = ssub.s32 %s19, 2
      %s35 = sadd.s32 1, %s28
      %p36 = scmp.ge.s32.totalorder %s35, 1
      %s37 = scalar_select %p36, 0, %s35
      %s38 = sadd.s32 1, %s27
      %s39 = scalar_select %p36, %s38, %s27
      %p40 = scmp.ge.s32.totalorder %s39, 1
      %s41 = scalar_select %p40, 0, %s39
      %s42 = sadd.s32 1, %s26
      %s43 = scalar_select %p40, %s42, %s26
      %p44 = scmp.ge.s32.totalorder %s43, 2
      %s45 = scalar_select %p44, 0, %s43
      %s46 = ssub.s32 %s26, %s45
      %p47 = scmp.eq.s32.totalorder %s46, 0
      %s49 = sadd.s32 %s48, 1
      %s50 = scalar_select %p47, %s48, %s49
      %p53 = pneg %p47
      %p54 = scmp.eq.s32.totalorder %s19, 1
      %p55 = por %p53, %p54
      %p56 = scmp.ne.s32.totalorder %s48, %s51
      %p57 = scmp.eq.s32.totalorder %s19, 0
      %p58 = por %p56, %p57
      %p59 = scmp.ne.s32.totalorder %s48, %s51
      %p60 = scmp.eq.s32.totalorder %s24, 1
      %p61 = por %p59, %p60
      %p62 = scmp.ne.s32.totalorder %s51, %s52
      %p63 = scmp.eq.s32.totalorder %s24, 0
      %p64 = por %p62, %p63
      %p65 = scmp.ne.s32.totalorder %s51, %s52
      %p66 = scmp.eq.s32.totalorder %s25, 1
      %p67 = por %p65, %p66
      %p69 = scmp.ne.s32.totalorder %s52, %s68
      %p70 = scmp.eq.s32.totalorder %s25, 0
      %p71 = por %p69, %p70
      %s72 = ssub.s32 %s26, %s45
      %p73 = scmp.eq.s32.totalorder %s72, 0
      %s75 = sadd.s32 %s74, 1
      %s76 = scalar_select %p73, %s74, %s75
      %p79 = pneg %p73
      %p80 = scmp.eq.s32.totalorder %s19, 1
      %p81 = por %p79, %p80
      %p82 = scmp.ne.s32.totalorder %s74, %s77
      %p83 = scmp.eq.s32.totalorder %s19, 0
      %p84 = por %p82, %p83
      %p85 = scmp.ne.s32.totalorder %s74, %s77
      %p86 = scmp.eq.s32.totalorder %s24, 1
      %p87 = por %p85, %p86
      %p88 = scmp.ne.s32.totalorder %s77, %s78
      %p89 = scmp.eq.s32.totalorder %s24, 0
      %p90 = por %p88, %p89
      %p91 = scmp.ne.s32.totalorder %s77, %s78
      %p92 = scmp.eq.s32.totalorder %s25, 1
      %p93 = por %p91, %p92
      %p95 = scmp.ne.s32.totalorder %s78, %s94
      %p96 = scmp.eq.s32.totalorder %s25, 0
      %p97 = por %p95, %p96
      %s98 = ssub.s32 %s28, %s37
      %s99 = ssub.s32 %s27, %s41
      %s100 = sor.u32 %s98, %s99
      %p101 = scmp.eq.s32.totalorder %s100, 0
      %s103 = sadd.s32 %s102, 1
      %s104 = scalar_select %p101, %s102, %s103
      %p107 = pneg %p101
      %p108 = scmp.eq.s32.totalorder %s19, 1
      %p109 = por %p107, %p108
      %p110 = scmp.ne.s32.totalorder %s102, %s105
      %p111 = scmp.eq.s32.totalorder %s19, 0
      %p112 = por %p110, %p111
      %p113 = scmp.ne.s32.totalorder %s102, %s105
      %p114 = scmp.eq.s32.totalorder %s24, 1
      %p115 = por %p113, %p114
      %p116 = scmp.ne.s32.totalorder %s105, %s106
      %p117 = scmp.eq.s32.totalorder %s24, 0
      %p118 = por %p116, %p117
      %p119 = scmp.ne.s32.totalorder %s105, %s106
      %p120 = scmp.eq.s32.totalorder %s25, 1
      %p121 = por %p119, %p120
      %p123 = scmp.ne.s32.totalorder %s106, %s122
      %p124 = scmp.eq.s32.totalorder %s25, 0
      %p125 = por %p123, %p124
      %s126 = ssub.s32 %s27, %s41
      %p127 = scmp.eq.s32.totalorder %s126, 0
      %s129 = sadd.s32 %s128, 1
      %s130 = scalar_select %p127, %s128, %s129
      %p133 = pneg %p127
      %p134 = scmp.eq.s32.totalorder %s19, 1
      %p135 = por %p133, %p134
      %p136 = scmp.ne.s32.totalorder %s128, %s131
      %p137 = scmp.eq.s32.totalorder %s19, 0
      %p138 = por %p136, %p137
      %p139 = scmp.ne.s32.totalorder %s128, %s131
      %p140 = scmp.eq.s32.totalorder %s24, 1
      %p141 = por %p139, %p140
      %p142 = scmp.ne.s32.totalorder %s131, %s132
      %p143 = scmp.eq.s32.totalorder %s24, 0
      %p144 = por %p142, %p143
      %p145 = scmp.ne.s32.totalorder %s131, %s132
      %p146 = scmp.eq.s32.totalorder %s25, 1
      %p147 = por %p145, %p146
      %p149 = scmp.ne.s32.totalorder %s132, %s148
      %p150 = scmp.eq.s32.totalorder %s25, 0
      %p151 = por %p149, %p150
      %s152 = ssub.s32 %s26, %s45
      %s153 = ssub.s32 %s27, %s41
      %s154 = sor.u32 %s152, %s153
      %p155 = scmp.eq.s32.totalorder %s154, 0
      %s157 = sadd.s32 %s156, 1
      %s158 = scalar_select %p155, %s156, %s157
      %p161 = pneg %p155
      %p162 = scmp.eq.s32.totalorder %s19, 1
      %p163 = por %p161, %p162
      %p164 = scmp.ne.s32.totalorder %s156, %s159
      %p165 = scmp.eq.s32.totalorder %s19, 0
      %p166 = por %p164, %p165
      %p167 = scmp.ne.s32.totalorder %s156, %s159
      %p168 = scmp.eq.s32.totalorder %s24, 1
      %p169 = por %p167, %p168
      %p170 = scmp.ne.s32.totalorder %s159, %s160
      %p171 = scmp.eq.s32.totalorder %s24, 0
      %p172 = por %p170, %p171
      %p173 = scmp.ne.s32.totalorder %s159, %s160
      %p174 = scmp.eq.s32.totalorder %s25, 1
      %p175 = por %p173, %p174
      %p177 = scmp.ne.s32.totalorder %s160, %s176
      %p178 = scmp.eq.s32.totalorder %s25, 0
      %p179 = por %p177, %p178
      %p180 = scmp.le.s32.totalorder 1, %s19
      %p181 = scmp.lt.s32.totalorder %s19, 3
      %p182 = pnand %p180, %p181
      %p183 = pneg %p182
      // Predicated region
      $region9: #{tpu_custom_call.1} parent=5 // pred_check
        _
      $region10: #{tpu_custom_call.1} parent=5 // pred_check_branch
        %185 = sbr.rel (%p182) target = $region12
      $region11: #{tpu_custom_call.1} parent=5 // pred_region
        %s186 = ssub.s32 %s19, 1
        // Predicated region
        $region13: #{tpu_custom_call.1} parent=11 // pred_check
          %p187 = pneg %p118
        $region14: #{tpu_custom_call.1} parent=11 // pred_check_branch
          %189 = sbr.rel (%p187) target = $region16
        $region15: #{tpu_custom_call.1} parent=11 // pred_region
          %s190 = smul.u32 16, %s31
          %192 = vsyncadd [#allocation7], 0
          %s193 = sadd.s32 %s30, %s190
          %s194 = smul.addr %s193, 8
          %s195 = scalar_lea.hbm %s2, %s194
          %s196 = sshll.u32 %s195, 4
          %s197 = int_to_ptr.hbm [resolvable:$true] %s196
          %s198 = sshll.u32 [#allocation8], 4
          %s199 = int_to_ptr.vmem [resolvable:$true] %s198
          %204 = dma.hbm_to_vmem [thread:$0]  %s197, 2048, %s199, [#allocation7], 128, 128, 8
        $region16: #{tpu_custom_call.1} parent=11 // pred_fallthru
          _
        // Predicated region
        $region17: #{tpu_custom_call.1} parent=11 // pred_check
          %p205 = pneg %p144
        $region18: #{tpu_custom_call.1} parent=11 // pred_check_branch
          %207 = sbr.rel (%p205) target = $region20
        $region19: #{tpu_custom_call.1} parent=11 // pred_region
          %p208 = scmp.lt.s32.totalorder %s30, 0
          %s209 = scalar_select %p208, %s30, 0
          %s210 = scalar_lea.vmem %s3, %s209
        $region20: #{tpu_custom_call.1} parent=11 // pred_fallthru
          _
      $region12: #{tpu_custom_call.1} parent=5 // pred_fallthru
        _
      %p211 = scmp.lt.s32.totalorder %s19, 2
      // Predicated region
      $region21: #{tpu_custom_call.1} parent=5 // pred_check
        %p212 = pneg %p211
      $region22: #{tpu_custom_call.1} parent=5 // pred_check_branch
        %214 = sbr.rel (%p212) target = $region24
      $region23: #{tpu_custom_call.1} parent=5 // pred_region
        // Predicated region
        $region25: #{tpu_custom_call.1} parent=23 // pred_check
          %p215 = pneg %p58
        $region26: #{tpu_custom_call.1} parent=23 // pred_check_branch
          %217 = sbr.rel (%p215) target = $region28
        $region27: #{tpu_custom_call.1} parent=23 // pred_region
          %s218 = sand.u32 %s48, 1
          %s219 = scalar_lea.sflag [#allocation4], %s218
          %s220 = sand.u32 %s48, 1
          %s221 = smul.addr %s220, 8
          %s222 = scalar_lea.vmem [#allocation3], %s221
          %224 = vsyncadd %s219, 0
          %s225 = smul.addr %s26, 8
          %s226 = scalar_lea.hbm %s0, %s225
          %s228 = sshll.u32 %s226, 4
          %s229 = int_to_ptr.hbm [resolvable:$true] %s228
          %s230 = sshll.u32 %s222, 4
          %s231 = int_to_ptr.vmem [resolvable:$true] %s230
          %233 = dma.hbm_to_vmem [thread:$0]  %s229, 128, %s231, %s219
        $region28: #{tpu_custom_call.1} parent=23 // pred_fallthru
          _
        // Predicated region
        $region29: #{tpu_custom_call.1} parent=23 // pred_check
          %p234 = pneg %p84
        $region30: #{tpu_custom_call.1} parent=23 // pred_check_branch
          %236 = sbr.rel (%p234) target = $region32
        $region31: #{tpu_custom_call.1} parent=23 // pred_region
          %s237 = sand.u32 %s19, 1
          %s238 = scalar_lea.sflag [#allocation7], %s237
          %s239 = sand.u32 %s74, 1
          %s240 = smul.addr %s239, 8
          %s241 = scalar_lea.vmem [#allocation6], %s240
          %243 = vsyncadd %s238, 0
          %s244 = smul.addr %s26, 8
          %s245 = scalar_lea.hbm %s1, %s244
          %s247 = sshll.u32 %s245, 4
          %s248 = int_to_ptr.hbm [resolvable:$true] %s247
          %s249 = sshll.u32 %s241, 4
          %s250 = int_to_ptr.vmem [resolvable:$true] %s249
          %252 = dma.hbm_to_vmem [thread:$0]  %s248, 128, %s250, %s238
        $region32: #{tpu_custom_call.1} parent=23 // pred_fallthru
          _
      $region24: #{tpu_custom_call.1} parent=5 // pred_fallthru
        _
      %p253 = scmp.le.s32.totalorder 1, %s19
      %p254 = scmp.lt.s32.totalorder %s19, 3
      %p255 = pnand %p253, %p254
      %p256 = pneg %p255
      // Predicated region
      $region33: #{tpu_custom_call.1} parent=5 // pred_check
        _
      $region34: #{tpu_custom_call.1} parent=5 // pred_check_branch
        %258 = sbr.rel (%p255) target = $region36
      $region35: #{tpu_custom_call.1} parent=5 // pred_region
        %s259 = ssub.s32 %s19, 1
        %s260 = sand.u32 %s51, 1
        %s261 = scalar_lea.sflag [#allocation4], %s260
        %s262 = sand.u32 %s51, 1
        %s263 = smul.addr %s262, 8
        %s264 = scalar_lea.vmem [#allocation3], %s263
        // Predicated region
        $region37: #{tpu_custom_call.1} parent=35 // pred_check
          %p265 = pneg %p64
        $region38: #{tpu_custom_call.1} parent=35 // pred_check_branch
          %267 = sbr.rel (%p265) target = $region40
        $region39: #{tpu_custom_call.1} parent=35 // pred_region
          %269 = dma.done %s261, 128
        $region40: #{tpu_custom_call.1} parent=35 // pred_fallthru
          _
        %s270 = sand.u32 %s24, 1
        %s271 = scalar_lea.sflag [#allocation7], %s270
        %s272 = sand.u32 %s77, 1
        %s273 = smul.addr %s272, 8
        %s274 = scalar_lea.vmem [#allocation6], %s273
        // Predicated region
        $region41: #{tpu_custom_call.1} parent=35 // pred_check
          %p275 = pneg %p90
        $region42: #{tpu_custom_call.1} parent=35 // pred_check_branch
          %277 = sbr.rel (%p275) target = $region44
        $region43: #{tpu_custom_call.1} parent=35 // pred_region
          %279 = dma.done %s271, 128
        $region44: #{tpu_custom_call.1} parent=35 // pred_fallthru
          _
        // Predicated region
        $region45: #{tpu_custom_call.1} parent=35 // pred_check
          %p280 = pneg %p118
        $region46: #{tpu_custom_call.1} parent=35 // pred_check_branch
          %282 = sbr.rel (%p280) target = $region48
        $region47: #{tpu_custom_call.1} parent=35 // pred_region
          %284 = dma.done [#allocation7], 2048
        $region48: #{tpu_custom_call.1} parent=35 // pred_fallthru
          _
        %s285 = sand.u32 %s51, 1
        %s286 = scalar_lea.sflag [#allocation4], %s285
        %s287 = sand.u32 %s51, 1
        %s288 = smul.addr %s287, 8
        %s289 = scalar_lea.vmem [#allocation3], %s288
        %p290 = pneg %p64
        %p291 = pneg %p61
        %s292 = sand.u32 %s24, 1
        %s293 = scalar_lea.sflag [#allocation7], %s292
        %s294 = sand.u32 %s77, 1
        %s295 = smul.addr %s294, 8
        %s296 = scalar_lea.vmem [#allocation6], %s295
        %p297 = pneg %p90
        %p298 = pneg %p87
        %p299 = pneg %p118
        %p300 = pneg %p115
        %p301 = scmp.lt.s32.totalorder %s30, 0
        %s302 = scalar_select %p301, %s30, 0
        %s303 = scalar_lea.vmem %s3, %s302
        %p304 = pneg %p144
        %p305 = pneg %p141
        %p306 = pneg %p172
        %p307 = pneg %p169
        %s308 = sand.u32 %s159, 1
        %s309 = scalar_lea.sflag [#allocation5], %s308
        %s310 = sand.u32 %s159, 1
        %s311 = smul.addr %s310, 8
        %s312 = scalar_lea.vmem [#allocation9], %s311
        %s313 = smul.u32 16, %s31
        %p314 = scmp.lt.s32.totalorder %s30, 0
        %s315 = scalar_select %p314, %s30, 0
        %s316 = scalar_lea.vmem %s3, %s315
        %s317 = smul.u32 %s31, 128
        %s318 = sshra.s32 %s317, 7
        %s319 = sand.u32 %s317, 127
        %s320 = scalar_lea.vmem %s274, %s318 [#allocation6]
        %v321 = vld [vmem:[%s320] sm:$0xff]
        %v322 = vld [vmem:[#allocation8] sm:$0xff]
        %v323 = vld [vmem:[#allocation8 + $0x8] sm:$0xff]
        %v324 = vld [vmem:[#allocation8 + $0x10] sm:$0xff]
        %v325 = vld [vmem:[#allocation8 + $0x18] sm:$0xff]
        %v326 = vld [vmem:[#allocation8 + $0x20] sm:$0xff]
        %v327 = vld [vmem:[#allocation8 + $0x28] sm:$0xff]
        %v328 = vld [vmem:[#allocation8 + $0x30] sm:$0xff]
        %v329 = vld [vmem:[#allocation8 + $0x38] sm:$0xff]
        %v330 = vld [vmem:[#allocation8 + $0x40] sm:$0xff]
        %v331 = vld [vmem:[#allocation8 + $0x48] sm:$0xff]
        %v332 = vld [vmem:[#allocation8 + $0x50] sm:$0xff]
        %v333 = vld [vmem:[#allocation8 + $0x58] sm:$0xff]
        %v334 = vld [vmem:[#allocation8 + $0x60] sm:$0xff]
        %v335 = vld [vmem:[#allocation8 + $0x68] sm:$0xff]
        %v336 = vld [vmem:[#allocation8 + $0x70] sm:$0xff]
        %v337 = vld [vmem:[#allocation8 + $0x78] sm:$0xff]
        %338 = vmatpush.msra.mxu0 %v337
        %339 = vmatpush.msra.mxu0 %v336
        %340 = vmatpush.msra.mxu0 %v335
        %341 = vmatpush.msra.mxu0 %v334
        %342 = vmatpush.msra.mxu0 %v333
        %343 = vmatpush.msra.mxu0 %v332
        %344 = vmatpush.msra.mxu0 %v331
        %345 = vmatpush.msra.mxu0 %v330
        %346 = vmatpush.msra.mxu0 %v329
        %347 = vmatpush.msra.mxu0 %v328
        %348 = vmatpush.msra.mxu0 %v327
        %349 = vmatpush.msra.mxu0 %v326
        %350 = vmatpush.msra.mxu0 %v325
        %351 = vmatpush.msra.mxu0 %v324
        %352 = vmatpush.msra.mxu0 %v323
        %353 = vmatpush.msra.mxu0 %v322
        %354 = vmatmul.f32.gmra.mxu0 %v321
        %v355 = vpop.f32.mrf.mxu0
        %v356 = vadd.f32 0.0, %v355
        %357 = vdwg.mxu0
        %p358 = scmp.eq.s32.totalorder %s31, 0
        // Predicated region
        $region49: #{tpu_custom_call.1} parent=35 // pred_check
          %p359 = pneg %p358
        $region50: #{tpu_custom_call.1} parent=35 // pred_check_branch
          %361 = sbr.rel (%p359) target = $region52
        $region51: #{tpu_custom_call.1} parent=35 // pred_region
          %362 = vst [vmem:[#allocation2] sm:$0xff] %v356
        $region52: #{tpu_custom_call.1} parent=35 // pred_fallthru
          _
        %p363 = scmp.gt.s32.totalorder %s31, 0
        // Predicated region
        $region53: #{tpu_custom_call.1} parent=35 // pred_check
          %p364 = pneg %p363
        $region54: #{tpu_custom_call.1} parent=35 // pred_check_branch
          %366 = sbr.rel (%p364) target = $region56
        $region55: #{tpu_custom_call.1} parent=35 // pred_region
          %v367 = vld [vmem:[#allocation2] sm:$0xff]
          %v368 = vadd.f32 %v367, %v356
          %369 = vst [vmem:[#allocation2] sm:$0xff] %v368
        $region56: #{tpu_custom_call.1} parent=35 // pred_fallthru
          _
        // Predicated region
        $region57: #{tpu_custom_call.1} parent=35 // pred_check
          %p370 = pneg %p358
        $region58: #{tpu_custom_call.1} parent=35 // pred_check_branch
          %372 = sbr.rel (%p370) target = $region60
        $region59: #{tpu_custom_call.1} parent=35 // pred_region
          %v373 = vld [vmem:[#allocation2] sm:$0xff]
          %v374 = vld [vmem:[%s264] sm:$0xff]
          %s375 = smul.u32 %s30, 128
          %s376 = sshra.s32 %s375, 7
          %s377 = sand.u32 %s375, 127
          %s378 = scalar_lea.vmem %s274, %s376 [#allocation6]
          %v379 = vld [vmem:[%s378] sm:$0xff]
          %v380 = vld [vmem:[%s316] sm:$0x1]
          %v382 = vperm.slane %v380, 0
          %vm384 = vcmask 64512
          %v386 = vsel %vm384, %v374, 0
          %388 = vmatpush.msra.mxu0 0.0
          %389 = vmatpush.msra.mxu0 0.0
          %390 = vmatpush.msra.mxu0 0.0
          %391 = vmatpush.msra.mxu0 0.0
          %392 = vmatpush.msra.mxu0 0.0
          %393 = vmatpush.msra.mxu0 0.0
          %394 = vmatpush.msra.mxu0 0.0
          %395 = vmatpush.msra.mxu0 0.0
          %396 = vmatpush.msra.mxu0 0.0
          %397 = vmatpush.msra.mxu0 0.0
          %398 = vmatpush.msra.mxu0 0.0
          %399 = vmatpush.msra.mxu0 0.0
          %400 = vmatpush.msra.mxu0 0.0
          %401 = vmatpush.msra.mxu0 0.0
          %402 = vmatpush.msra.mxu0 0.0
          %403 = vmatpush.msra.mxu0 %v373
          %404 = vmatmul.f32.gmra.mxu0 %v386
          %v405 = vpop.f32.mrf.mxu0
          %v406 = vadd.f32 %v382, %v405
          %407 = vdwg.mxu0
          %v408 = vmax.f32 %v406, 0.0
          %v409 = vadd.f32 %v408, %v379
          %410 = vst [vmem:[%s312] sm:$0xff] %v409
        $region60: #{tpu_custom_call.1} parent=35 // pred_fallthru
          _
        %s411 = sand.u32 %s159, 1
        %s412 = scalar_lea.sflag [#allocation5], %s411
        %s413 = sand.u32 %s159, 1
        %s414 = smul.addr %s413, 8
        %s415 = scalar_lea.vmem [#allocation9], %s414
        // Predicated region
        $region61: #{tpu_custom_call.1} parent=35 // pred_check
          %p416 = pneg %p169
        $region62: #{tpu_custom_call.1} parent=35 // pred_check_branch
          %418 = sbr.rel (%p416) target = $region64
        $region63: #{tpu_custom_call.1} parent=35 // pred_region
          %420 = vsyncadd %s412, 0
          %s421 = sadd.s32 %s30, %s29
          %s422 = smul.addr %s421, 8
          %s423 = scalar_lea.hbm %s4, %s422
          %s425 = sshll.u32 %s415, 4
          %s426 = int_to_ptr.vmem [resolvable:$true] %s425
          %s427 = sshll.u32 %s423, 4
          %s428 = int_to_ptr.hbm [resolvable:$true] %s427
          %430 = dma.vmem_to_hbm [thread:$0]  %s426, 128, %s428, %s412
        $region64: #{tpu_custom_call.1} parent=35 // pred_fallthru
          _
      $region36: #{tpu_custom_call.1} parent=5 // pred_fallthru
        _
      %p431 = scmp.le.s32.totalorder 2, %s19
      // Predicated region
      $region65: #{tpu_custom_call.1} parent=5 // pred_check
        %p432 = pneg %p431
      $region66: #{tpu_custom_call.1} parent=5 // pred_check_branch
        %434 = sbr.rel (%p432) target = $region68
      $region67: #{tpu_custom_call.1} parent=5 // pred_region
        %s435 = ssub.s32 %s19, 2
        // Predicated region
        $region69: #{tpu_custom_call.1} parent=67 // pred_check
          %p436 = pneg %p175
        $region70: #{tpu_custom_call.1} parent=67 // pred_check_branch
          %438 = sbr.rel (%p436) target = $region72
        $region71: #{tpu_custom_call.1} parent=67 // pred_region
          %s439 = sand.u32 %s160, 1
          %s440 = scalar_lea.sflag [#allocation5], %s439
          %s441 = sand.u32 %s160, 1
          %s442 = smul.addr %s441, 8
          %s443 = scalar_lea.vmem [#allocation9], %s442
          %445 = dma.done %s440, 128
        $region72: #{tpu_custom_call.1} parent=67 // pred_fallthru
          _
      $region68: #{tpu_custom_call.1} parent=5 // pred_fallthru
        _
    $region6: #{tpu_custom_call.1} parent=1 // loop_footer
      %s23 = sadd.s32 1, %s19
    $region7: #{tpu_custom_call.1} parent=1 // loop_footer_branch
      %18 = sbr.rel target = $region3
    $region8: #{tpu_custom_call.1} parent=1 // loop_exit
      _
    %446 = vsyncpa [#allocation4], 1
    %s447 = scalar_lea.sflag [#allocation4], 1
    %448 = vsyncpa %s447, 1
    %449 = vsyncpa [#allocation7], 1
    %s450 = scalar_lea.sflag [#allocation7], 1
    %451 = vsyncpa %s450, 1
    %452 = vsyncpa [#allocation5], 1
    %s453 = scalar_lea.sflag [#allocation5], 1
    %454 = vsyncpa %s453, 1

</llo_original>
